<compile_context>
chip_gen: v7x
topology: tpu7x:2x2x1
jax: 0.10.0
libtpu: 0.0.40
codegen_flags: <defaults>
</compile_context>

<pallas_src>
import functools

import jax
import jax.numpy as jnp
from jax import lax
from jax.experimental import pallas as pl
from jax.experimental.pallas import tpu as pltpu

TOK_TILE = 256                       # max tokens per grid step (multiple of 8)
DMA_DEPTH = 32                       # outstanding row-gather DMAs (semaphore ring depth)
LANES = 128                          # TPU lane width; D padded to a multiple of this
RESIDENT_TABLE_BYTES = 4 * 1024 * 1024   # table <= 4 MiB  -> VMEM-resident fast path
RESIDENT_MAX_VOCAB = 2048                # keep the (tok_tile, V) one-hot small


# --------------------------------------------------------------------------------------
# Resident-table fast path: whole table in VMEM, one-hot MXU gather.
# --------------------------------------------------------------------------------------
def _embedding_resident_kernel(ids_ref, scale_ref, w_ref, o_ref):
    # ids_ref  : (tok_tile, 1) int32 VMEM   -- token ids for this tile
    # scale_ref: (tok_tile, 1) f32   VMEM   -- per-token word-type dropout scale
    # w_ref    : (V, D_pad)          VMEM   -- resident table (constant block index)
    # o_ref    : (tok_tile, D_pad)   VMEM   -- output block
    tok_tile = ids_ref.shape[0]
    vocab = w_ref.shape[0]
    ids = ids_ref[...]                                                   # (tok_tile, 1)
    hot = lax.broadcasted_iota(jnp.int32, (tok_tile, vocab), 1) == ids   # (tok_tile, V)
    rows = jnp.dot(hot.astype(w_ref.dtype), w_ref[...],
                   preferred_element_type=jnp.float32,
                   precision=lax.Precision.HIGHEST)                      # near-exact f32 gather
    o_ref[...] = (rows * scale_ref[...]).astype(o_ref.dtype)


# --------------------------------------------------------------------------------------
# HBM gather path: row-DMA ring straight into the output block.
# --------------------------------------------------------------------------------------
def _embedding_gather_kernel(ids_ref, scale_ref, w_hbm, o_ref, sems, *, n_last):
    # ids_ref  : (N_pad,)          int32 SMEM (scalar prefetch) -- flattened token ids
    # scale_ref: (tok_tile, 1)     f32   VMEM -- per-token word-type dropout scale
    # w_hbm    : (V, D_pad)        HBM        -- embedding table (never copied wholesale)
    # o_ref    : (tok_tile, D_pad) VMEM       -- output block; rows are DMA'd directly into it
    # sems     : (DMA_DEPTH,)      DMA semaphores
    # n_last   : static int -- number of REAL tokens in the last tile (1..tok_tile)
    tok_tile = o_ref.shape[0]
    vocab = w_hbm.shape[0]
    base = pl.program_id(0) * tok_tile

    def row_copy(t, idx):
        # One builder for both start and wait: shapes (and semaphore byte counts) cannot drift.
        return pltpu.make_async_copy(
            w_hbm.at[pl.ds(idx, 1)],        # (1, D_pad) row in HBM
            o_ref.at[pl.ds(t, 1)],          # (1, D_pad) row of the output block
            sems.at[t % DMA_DEPTH],
        )

    def token_id(t):
        # Clamp: torch raises on OOB ids, an unchecked DMA would fault the chip.
        return jnp.clip(ids_ref[base + t], 0, vocab - 1)

    def gather(n_rows):                      # n_rows is a static Python int
        n_prime = min(DMA_DEPTH, n_rows)
        for t in range(n_prime):             # prime the ring (static unroll)
            row_copy(t, token_id(t)).start()
        n_main = n_rows - n_prime
        if n_main > 0:
            def step(t, carry):
                nxt = token_id(t + DMA_DEPTH)          # read SMEM id BEFORE the wait
                row_copy(t, 0).wait()
                row_copy(t + DMA_DEPTH, nxt).start()   # unconditional start (no predicate)
                return carry
            lax.fori_loop(0, n_main, step, 0, unroll=min(8, n_main))
        for t in range(n_main, n_rows):      # drain the ring (static unroll)
            row_copy(t, 0).wait()

    if n_last == tok_tile:
        gather(tok_tile)                     # every tile is full
    else:
        last = pl.num_programs(0) - 1

        @pl.when(pl.program_id(0) != last)
        def _():
            gather(tok_tile)

        @pl.when(pl.program_id(0) == last)
        def _():
            gather(n_last)                   # padded tokens issue no DMAs at all

    # TODO(synk): cross-tile prefetch of the next tile's first DMA_DEPTH rows would need a
    # persistent double-buffered scratch; skipped since rows land directly in the output block.

    # One dense, lane-aligned read-modify-write of the whole tile (f32 math).
    o_ref[...] = (o_ref[...].astype(jnp.float32) * scale_ref[...]).astype(o_ref.dtype)


# --------------------------------------------------------------------------------------
# Wrapper
# --------------------------------------------------------------------------------------
def embedding_dropout_lookup(words, weight, mask_scale, *, embedding_dim=None,
                             force_gather=False):
    """words: (B, S) int ids; weight: (V, D or D_pad); mask_scale: (V,) per-word-type scale."""
    assert words.ndim == 2, "words must be (batch, seq)"
    B, S = words.shape
    V, Dw = weight.shape
    D = int(embedding_dim) if embedding_dim is not None else Dw
    N = B * S
    itemsize = jnp.dtype(weight.dtype).itemsize

    D_pad = pl.cdiv(D, LANES) * LANES
    if Dw != D_pad:
        # Fallback only: EmbeddingDropout pre-pads at init so this is normally a no-op.
        weight = jnp.pad(weight, ((0, 0), (0, D_pad - Dw)))

    table_bytes = V * D_pad * itemsize
    use_resident = ((not force_gather)
                    and table_bytes <= RESIDENT_TABLE_BYTES
                    and V <= RESIDENT_MAX_VOCAB)

    # Token tile: large enough to amortize per-step overhead; capped so the double-buffered
    # (tok_tile, D_pad) output block (+ resident table) fits v5e's 16 MiB default scoped VMEM
    # and v7x's 64 MiB physical; shrunk for small N so >=2 tiles feed both v7x TensorCores.
    budget = (6 if use_resident else 12) * 1024 * 1024
    tok_tile = min(TOK_TILE, max(8, (budget // (2 * D_pad * itemsize)) // 8 * 8))
    if N < 2 * tok_tile:
        tok_tile = max(8, 8 * pl.cdiv(pl.cdiv(N, 2), 8))

    n_tiles = pl.cdiv(N, tok_tile)
    N_pad = n_tiles * tok_tile
    n_last = N - (n_tiles - 1) * tok_tile    # real tokens in the last tile (static)

    ids = words.reshape(N).astype(jnp.int32)
    if N_pad != N:
        ids = jnp.pad(ids, (0, N_pad - N))   # padded ids -> 0; their rows are sliced off below

    # Word-TYPE dropout scale gathered per token in the wrapper (O(N) f32): the (V,) mask never
    # enters VMEM, and the multiply runs in f32 even for low-precision tables.
    scale = mask_scale.astype(jnp.float32)[ids].reshape(N_pad, 1)

    cparams = pltpu.CompilerParams(
        dimension_semantics=("parallel",),   # disjoint output tiles -> dual-TC on v7x
        vmem_limit_bytes=32 * 1024 * 1024,
    )

    if use_resident:
        out = pl.pallas_call(
            _embedding_resident_kernel,
            out_shape=jax.ShapeDtypeStruct((N_pad, D_pad), weight.dtype),
            grid=(n_tiles,),
            in_specs=[
                pl.BlockSpec((tok_tile, 1), lambda i: (i, 0)),      # token ids
                pl.BlockSpec((tok_tile, 1), lambda i: (i, 0)),      # per-token scale
                pl.BlockSpec((V, D_pad), lambda i: (0, 0)),         # resident table (fetched once)
            ],
            out_specs=pl.BlockSpec((tok_tile, D_pad), lambda i: (i, 0)),
            compiler_params=cparams,
        )(ids.reshape(N_pad, 1), scale, weight)
    else:
        out = pl.pallas_call(
            functools.partial(_embedding_gather_kernel, n_last=n_last),
            out_shape=jax.ShapeDtypeStruct((N_pad, D_pad), weight.dtype),
            grid_spec=pltpu.PrefetchScalarGridSpec(
                num_scalar_prefetch=1,                               # ids -> SMEM
                grid=(n_tiles,),
                in_specs=[
                    pl.BlockSpec((tok_tile, 1), lambda i, ids: (i, 0)),   # per-token scale
                    pl.BlockSpec(memory_space=pl.ANY),                    # table stays in HBM
                ],
                out_specs=pl.BlockSpec((tok_tile, D_pad), lambda i, ids: (i, 0)),
                scratch_shapes=[pltpu.SemaphoreType.DMA((DMA_DEPTH,))],   # DMA ring
            ),
            compiler_params=cparams,
        )(ids, scale, weight)

    return out[:N, :D].reshape(B, S, D)


class EmbeddingDropout:
    """JAX/Pallas port of the PyTorch EmbeddingDropout module (forward only)."""

    def __init__(self, num_embeddings, embedding_dim, embedding_dropout=0.0, *, key):
        self.num_embeddings = num_embeddings
        self.embedding_dim = embedding_dim
        self.dropoute = embedding_dropout
        # nn.Embedding default init: weight ~ N(0, 1); kept in f32 to match the reference.
        self.weight = jax.random.normal(
            key, (num_embeddings, embedding_dim), dtype=jnp.float32
        )
        # Lane padding hoisted out of the per-call wrapper: pad ONCE at init.
        d_pad = pl.cdiv(embedding_dim, LANES) * LANES
        self._weight_padded = (
            self.weight if d_pad == embedding_dim
            else jnp.pad(self.weight, ((0, 0), (0, d_pad - embedding_dim)))
        )

    def __call__(self, words, *, training=True, dropout_key=None, force_gather=False):
        if self.dropoute and training:
            keep = 1.0 - self.dropoute
            bern = jax.random.bernoulli(
                dropout_key, p=keep, shape=(self.num_embeddings,)
            )
            mask_scale = bern.astype(jnp.float32) / keep
        else:
            mask_scale = jnp.ones((self.num_embeddings,), jnp.float32)
        return embedding_dropout_lookup(
            words, self._weight_padded, mask_scale,
            embedding_dim=self.embedding_dim, force_gather=force_gather)


if __name__ == "__main__":
    key = jax.random.PRNGKey(0)
    k_w, k_ids, k_drop, k_ids2 = jax.random.split(key, 4)

    V, D = 64, 32          # vocab size, embedding dim
    B, S = 2, 8            # batch, sequence length (B*S = 16 tokens)

    module = EmbeddingDropout(V, D, embedding_dropout=0.25, key=k_w)
    words = jax.random.randint(k_ids, (B, S), 0, V, dtype=jnp.int32)

    # pure-JAX reference of the exact PyTorch semantics
    keep = 1.0 - module.dropoute
    bern = jax.random.bernoulli(k_drop, p=keep, shape=(V,)).astype(jnp.float32) / keep
    ref = (bern[:, None] * module.weight)[words]

    # 1) resident-table (VMEM) fast path
    out = jax.block_until_ready(module(words, training=True, dropout_key=k_drop))
    assert out.shape == (B, S, D)
    assert jnp.allclose(out, ref, atol=1e-5), "resident path mismatch vs reference"

    # 2) HBM DMA-gather path (forced), full tiles
    out_g = jax.block_until_ready(
        module(words, training=True, dropout_key=k_drop, force_gather=True))
    assert jnp.allclose(out_g, ref, atol=1e-6), "gather path mismatch vs reference"

    # 3) HBM DMA-gather path with a ragged last tile (N = 15 tokens)
    words2 = jax.random.randint(k_ids2, (3, 5), 0, V, dtype=jnp.int32)
    ref2 = (bern[:, None] * module.weight)[words2]
    out_g2 = jax.block_until_ready(
        module(words2, training=True, dropout_key=k_drop, force_gather=True))
    assert jnp.allclose(out_g2, ref2, atol=1e-6), "ragged gather path mismatch vs reference"

    # 4) eval / no-dropout path
    out_eval = jax.block_until_ready(module(words, training=False))
    assert jnp.allclose(out_eval, module.weight[words], atol=1e-5)

    print("KERNEL_OK")
</pallas_src>

<mosaic_0001>
module attributes {stable_mosaic.version = 11 : i64} {
  func.func @_embedding_resident_kernel(%arg0: i32, %arg1: memref<8x1xi32, #tpu.memory_space<vmem>>, %arg2: memref<8x1xf32, #tpu.memory_space<vmem>>, %arg3: memref<64x128xf32, #tpu.memory_space<vmem>>, %arg4: memref<8x128xf32, #tpu.memory_space<vmem>>) attributes {dimension_semantics = [#tpu.dimension_semantics<parallel>], iteration_bounds = array<i64: 2>, scalar_prefetch = 0 : i64, scratch_operands = 0 : i64, tpu.core_type = #tpu.core_type<tc>, window_params = [{transform_indices = @transform_0, window_bounds = array<i64: 8, 1>}, {transform_indices = @transform_1, window_bounds = array<i64: 8, 1>}, {pipeline_mode = #tpu.pipeline_mode<synchronous>, transform_indices = @transform_2, window_bounds = array<i64: 64, 128>}, {transform_indices = @transform_3, window_bounds = array<i64: 8, 128>}]} {
    %c0 = arith.constant 0 : index
    %c0_0 = arith.constant 0 : index
    %0 = vector.load %arg1[%c0, %c0_0] : memref<8x1xi32, #tpu.memory_space<vmem>>, vector<8x1xi32>
    %1 = tpu.iota {dimensions = array<i32: 1>} : vector<8x64xi32>
    %2 = vector.broadcast %0 : vector<8x1xi32> to vector<8x64xi32>
    %3 = arith.cmpi eq, %1, %2 : vector<8x64xi32>
    %4 = arith.extui %3 : vector<8x64xi1> to vector<8x64xi32>
    %5 = arith.sitofp %4 : vector<8x64xi32> to vector<8x64xf32>
    %c0_1 = arith.constant 0 : index
    %c0_2 = arith.constant 0 : index
    %6 = vector.load %arg3[%c0_1, %c0_2] : memref<64x128xf32, #tpu.memory_space<vmem>>, vector<64x128xf32>
    %cst = arith.constant dense<0.000000e+00> : vector<8x128xf32>
    %7 = tpu.matmul %5, %6, %cst {dimension_numbers = #tpu.dot_dimension_numbers<[1], [0], [0], [1], [0, 0, 1, 1], [], []>, precision = #tpu.contract_precision<fp32>} : vector<8x64xf32>, vector<64x128xf32>, vector<8x128xf32> -> vector<8x128xf32>
    %c0_3 = arith.constant 0 : index
    %c0_4 = arith.constant 0 : index
    %8 = vector.load %arg2[%c0_3, %c0_4] : memref<8x1xf32, #tpu.memory_space<vmem>>, vector<8x1xf32>
    %9 = vector.broadcast %8 : vector<8x1xf32> to vector<8x128xf32>
    %10 = arith.mulf %7, %9 : vector<8x128xf32>
    %c0_5 = arith.constant 0 : index
    %c0_6 = arith.constant 0 : index
    %11 = vector.load %arg4[%c0_5, %c0_6] : memref<8x128xf32, #tpu.memory_space<vmem>>, vector<8x128xf32>
    tpu.vector_store %arg4[%c0_5, %c0_6], %10 {strides = array<i32>} : memref<8x128xf32, #tpu.memory_space<vmem>>, vector<8x128xf32>,
    return
  }
  func.func @transform_0(%arg0: i32) -> (i32, i32) {
    %c0_i32 = arith.constant 0 : i32
    %c0_i32_0 = arith.constant 0 : i32
    return %arg0, %c0_i32 : i32, i32
  }
  func.func @transform_1(%arg0: i32) -> (i32, i32) {
    %c0_i32 = arith.constant 0 : i32
    %c0_i32_0 = arith.constant 0 : i32
    return %arg0, %c0_i32 : i32, i32
  }
  func.func @transform_2(%arg0: i32) -> (i32, i32) {
    %c0_i32 = arith.constant 0 : i32
    %c0_i32_0 = arith.constant 0 : i32
    %c0_i32_1 = arith.constant 0 : i32
    return %c0_i32, %c0_i32_0 : i32, i32
  }
  func.func @transform_3(%arg0: i32) -> (i32, i32) {
    %c0_i32 = arith.constant 0 : i32
    %c0_i32_0 = arith.constant 0 : i32
    return %arg0, %c0_i32 : i32, i32
  }
}

</mosaic_0001>

<llo_original>
// kernel: tpu_custom_call.1
$region0: #{tpu_custom_call.1}
  #allocation0 [shape = 'u32[]', space=smem, size = 0x4, offset = 0x4, fixed_abs, tag = 'smem constant byte address 0x4 - core index']
  #allocation1 [shape = 'u32[144,128]{1,0:T(1,128)}', space=vmem, size = 0x12000, scoped, tag = 'internal scratch']
  %s0 = inlined_call_operand.vmem [shape: s32[16,1], index: 0, kind: input, shape index: {}]
  %s1 = inlined_call_operand.vmem [shape: f32[16,1], index: 1, kind: input, shape index: {}]
  %s2 = inlined_call_operand.hbm [shape: f32[64,128], index: 2, kind: input, shape index: {}]
  %s3 = inlined_call_operand.hbm [shape: f32[16,128], index: 3, kind: output, shape index: {}]
  %s4 = sld [smem:[#allocation0]]
  $region49: #{tpu_custom_call.1} parent=0
    _
  %s6 = ssub.s32 1, %s4
  %s7 = scalar_select 0, %s6, %s4
  $region1: #{tpu_custom_call.1} parent=0
    #allocation2 [shape = 'u8[32768]{0}', space=vmem, size = 0x8000, scoped, tag = 'input window, operand 2, single buffered']
    #allocation3 [shape = 's32[2]{0}', space=sflag, size = 0x8, scoped, tag = 'scoped memory for tpu_custom_call.1']
    #allocation4 [shape = 's32[2]{0}', space=sflag, size = 0x8, scoped, tag = 'scoped memory for tpu_custom_call.1']
    #allocation5 [shape = 'u8[8192]{0}', space=vmem, size = 0x2000, scoped, tag = 'output window, operand 0']
    %8 = vsyncpa [#allocation3], 0
    %9 = vsyncpa [#allocation4], 0
    %s10 = scalar_lea.sflag [#allocation4], 1
    %11 = vsyncpa %s10, 0
    loop: start=0, step=1, limit=4
    $region2: #{tpu_custom_call.1} parent=1 // loop_pre_header
      _
    $region3: #{tpu_custom_call.1} parent=1 // loop_header
      %s13 = sphi 0, %s17
      %p14 = scmp.ge.s32.totalorder %s13, 4
      %s23 = sphi 0, %s25
      %s26 = sphi 0, %s23
      %s27 = sphi 0, %s26
      %s43 = sphi 0, %s27
      %s49 = sphi 0, %s51
      %s52 = sphi 0, %s49
      %s53 = sphi 0, %s52
      %s69 = sphi 0, %s53
      %s73 = sphi 0, %s73
      %s75 = sphi 0, %s73
      %s76 = sphi 0, %s75
      %s90 = sphi 0, %s76
      %s96 = sphi 0, %s98
      %s99 = sphi 0, %s96
      %s100 = sphi 0, %s99
      %s116 = sphi 0, %s100
    $region4: #{tpu_custom_call.1} parent=1 // loop_header_branch
      %16 = sbr.rel (%p14) target = $region8
    $region5: #{tpu_custom_call.1} parent=1 // loop_body
      %s18 = ssub.s32 %s13, 1
      %s19 = ssub.s32 %s13, 2
      %s20 = sadd.s32 %s13, 1
      %s21 = ssub.s32 %s13, %s20
      %p22 = scmp.eq.s32.totalorder %s21, 0
      %s24 = sadd.s32 %s23, 1
      %s25 = scalar_select %p22, %s23, %s24
      %p28 = pneg %p22
      %p29 = scmp.eq.s32.totalorder %s13, 1
      %p30 = por %p28, %p29
      %p31 = scmp.ne.s32.totalorder %s23, %s26
      %p32 = scmp.eq.s32.totalorder %s13, 0
      %p33 = por %p31, %p32
      %p34 = scmp.ne.s32.totalorder %s23, %s26
      %p35 = scmp.eq.s32.totalorder %s18, 1
      %p36 = por %p34, %p35
      %p37 = scmp.ne.s32.totalorder %s26, %s27
      %p38 = scmp.eq.s32.totalorder %s18, 0
      %p39 = por %p37, %p38
      %p40 = scmp.ne.s32.totalorder %s26, %s27
      %p41 = scmp.eq.s32.totalorder %s19, 1
      %p42 = por %p40, %p41
      %p44 = scmp.ne.s32.totalorder %s27, %s43
      %p45 = scmp.eq.s32.totalorder %s19, 0
      %p46 = por %p44, %p45
      %s47 = ssub.s32 %s13, %s20
      %p48 = scmp.eq.s32.totalorder %s47, 0
      %s50 = sadd.s32 %s49, 1
      %s51 = scalar_select %p48, %s49, %s50
      %p54 = pneg %p48
      %p55 = scmp.eq.s32.totalorder %s13, 1
      %p56 = por %p54, %p55
      %p57 = scmp.ne.s32.totalorder %s49, %s52
      %p58 = scmp.eq.s32.totalorder %s13, 0
      %p59 = por %p57, %p58
      %p60 = scmp.ne.s32.totalorder %s49, %s52
      %p61 = scmp.eq.s32.totalorder %s18, 1
      %p62 = por %p60, %p61
      %p63 = scmp.ne.s32.totalorder %s52, %s53
      %p64 = scmp.eq.s32.totalorder %s18, 0
      %p65 = por %p63, %p64
      %p66 = scmp.ne.s32.totalorder %s52, %s53
      %p67 = scmp.eq.s32.totalorder %s19, 1
      %p68 = por %p66, %p67
      %p70 = scmp.ne.s32.totalorder %s53, %s69
      %p71 = scmp.eq.s32.totalorder %s19, 0
      %p72 = por %p70, %p71
      %s74 = sadd.s32 %s73, 1
      %p77 = scmp.eq.s32.totalorder %s13, 1
      %p78 = scmp.ne.s32.totalorder %s73, %s75
      %p79 = scmp.eq.s32.totalorder %s13, 0
      %p80 = por %p78, %p79
      %p81 = scmp.ne.s32.totalorder %s73, %s75
      %p82 = scmp.eq.s32.totalorder %s18, 1
      %p83 = por %p81, %p82
      %p84 = scmp.ne.s32.totalorder %s75, %s76
      %p85 = scmp.eq.s32.totalorder %s18, 0
      %p86 = por %p84, %p85
      %p87 = scmp.ne.s32.totalorder %s75, %s76
      %p88 = scmp.eq.s32.totalorder %s19, 1
      %p89 = por %p87, %p88
      %p91 = scmp.ne.s32.totalorder %s76, %s90
      %p92 = scmp.eq.s32.totalorder %s19, 0
      %p93 = por %p91, %p92
      %s94 = ssub.s32 %s13, %s20
      %p95 = scmp.eq.s32.totalorder %s94, 0
      %s97 = sadd.s32 %s96, 1
      %s98 = scalar_select %p95, %s96, %s97
      %p101 = pneg %p95
      %p102 = scmp.eq.s32.totalorder %s13, 1
      %p103 = por %p101, %p102
      %p104 = scmp.ne.s32.totalorder %s96, %s99
      %p105 = scmp.eq.s32.totalorder %s13, 0
      %p106 = por %p104, %p105
      %p107 = scmp.ne.s32.totalorder %s96, %s99
      %p108 = scmp.eq.s32.totalorder %s18, 1
      %p109 = por %p107, %p108
      %p110 = scmp.ne.s32.totalorder %s99, %s100
      %p111 = scmp.eq.s32.totalorder %s18, 0
      %p112 = por %p110, %p111
      %p113 = scmp.ne.s32.totalorder %s99, %s100
      %p114 = scmp.eq.s32.totalorder %s19, 1
      %p115 = por %p113, %p114
      %p117 = scmp.ne.s32.totalorder %s100, %s116
      %p118 = scmp.eq.s32.totalorder %s19, 0
      %p119 = por %p117, %p118
      %p120 = scmp.le.s32.totalorder 1, %s13
      %p121 = scmp.lt.s32.totalorder %s13, 3
      %p122 = pnand %p120, %p121
      %p123 = pneg %p122
      // Predicated region
      $region9: #{tpu_custom_call.1} parent=5 // pred_check
        _
      $region10: #{tpu_custom_call.1} parent=5 // pred_check_branch
        %125 = sbr.rel (%p122) target = $region12
      $region11: #{tpu_custom_call.1} parent=5 // pred_region
        %s126 = ssub.s32 %s13, 1
        // Predicated region
        $region13: #{tpu_custom_call.1} parent=11 // pred_check
          %p127 = pneg %p86
        $region14: #{tpu_custom_call.1} parent=11 // pred_check_branch
          %129 = sbr.rel (%p127) target = $region16
        $region15: #{tpu_custom_call.1} parent=11 // pred_region
          %s131 = ssub.s32 1024, 1024
          %132 = vsyncadd [#allocation3], %s131
          %s133 = sshll.u32 [#allocation2], 4
          %s134 = int_to_ptr.vmem [resolvable:$true] %s133
          %139 = dma.hbm_to_vmem [thread:$0]  %s2, 1024, %s134, [#allocation3], 128, 128, 8
        $region16: #{tpu_custom_call.1} parent=11 // pred_fallthru
          _
      $region12: #{tpu_custom_call.1} parent=5 // pred_fallthru
        _
      %p140 = scmp.lt.s32.totalorder %s13, 2
      // Predicated region
      $region17: #{tpu_custom_call.1} parent=5 // pred_check
        %p141 = pneg %p140
      $region18: #{tpu_custom_call.1} parent=5 // pred_check_branch
        %143 = sbr.rel (%p141) target = $region20
      $region19: #{tpu_custom_call.1} parent=5 // pred_region
        // Predicated region
        $region21: #{tpu_custom_call.1} parent=19 // pred_check
          %p144 = pneg %p33
        $region22: #{tpu_custom_call.1} parent=19 // pred_check_branch
          %146 = sbr.rel (%p144) target = $region24
        $region23: #{tpu_custom_call.1} parent=19 // pred_region
          %p147 = scmp.lt.s32.totalorder %s13, 1
          %s148 = scalar_select %p147, %s13, 1
          %s149 = smul.addr %s148, 8
          %s150 = scalar_lea.vmem %s0, %s149
        $region24: #{tpu_custom_call.1} parent=19 // pred_fallthru
          _
        // Predicated region
        $region25: #{tpu_custom_call.1} parent=19 // pred_check
          %p151 = pneg %p59
        $region26: #{tpu_custom_call.1} parent=19 // pred_check_branch
          %153 = sbr.rel (%p151) target = $region28
        $region27: #{tpu_custom_call.1} parent=19 // pred_region
          %p154 = scmp.lt.s32.totalorder %s13, 1
          %s155 = scalar_select %p154, %s13, 1
          %s156 = smul.addr %s155, 8
          %s157 = scalar_lea.vmem %s1, %s156
        $region28: #{tpu_custom_call.1} parent=19 // pred_fallthru
          _
      $region20: #{tpu_custom_call.1} parent=5 // pred_fallthru
        _
      %p158 = scmp.le.s32.totalorder 1, %s13
      %p159 = scmp.lt.s32.totalorder %s13, 3
      %p160 = pnand %p158, %p159
      %p161 = pneg %p160
      // Predicated region
      $region29: #{tpu_custom_call.1} parent=5 // pred_check
        _
      $region30: #{tpu_custom_call.1} parent=5 // pred_check_branch
        %163 = sbr.rel (%p160) target = $region32
      $region31: #{tpu_custom_call.1} parent=5 // pred_region
        %s164 = ssub.s32 %s13, 1
        // Predicated region
        $region33: #{tpu_custom_call.1} parent=31 // pred_check
          %p165 = pneg %p86
        $region34: #{tpu_custom_call.1} parent=31 // pred_check_branch
          %167 = sbr.rel (%p165) target = $region36
        $region35: #{tpu_custom_call.1} parent=31 // pred_region
          %168 = dma.done [#allocation3], 1024
        $region36: #{tpu_custom_call.1} parent=31 // pred_fallthru
          _
        %p169 = scmp.lt.s32.totalorder %s18, 1
        %s170 = scalar_select %p169, %s18, 1
        %s171 = smul.addr %s170, 8
        %s172 = scalar_lea.vmem %s0, %s171
        %p173 = pneg %p39
        %p174 = pneg %p36
        %p175 = scmp.lt.s32.totalorder %s18, 1
        %s176 = scalar_select %p175, %s18, 1
        %s177 = smul.addr %s176, 8
        %s178 = scalar_lea.vmem %s1, %s177
        %p179 = pneg %p65
        %p180 = pneg %p62
        %p181 = pneg %p86
        %p182 = pneg %p83
        %p183 = pneg %p112
        %p184 = pneg %p109
        %s185 = sand.u32 %s99, 1
        %s186 = scalar_lea.sflag [#allocation4], %s185
        %s187 = sand.u32 %s99, 1
        %s188 = smul.addr %s187, 8
        %s189 = scalar_lea.vmem [#allocation5], %s188
        %p190 = scmp.lt.s32.totalorder %s18, 1
        %s191 = scalar_select %p190, %s18, 1
        %s192 = smul.addr %s191, 8
        %s193 = scalar_lea.vmem %s0, %s192
        %p194 = scmp.lt.s32.totalorder %s18, 1
        %s195 = scalar_select %p194, %s18, 1
        %s196 = smul.addr %s195, 8
        %s197 = scalar_lea.vmem %s1, %s196
        %v198 = vld [vmem:[%s193] sm:$0xff]
        %v199 = vlaneseq
        %v200 = vand.u32 %v199, 127
        %201 = vset.pattern.permute.xlu0 0
        %202 = vperm.xlu0 %201, %v198
        %v203 = vpop.permute.xlu0 %202
        %vm204 = vcmp.eq.s32.totalorder %v200, %v203
        %v205 = vsel %vm204, 1, 0
        %v206 = vcvt.s32.f32 %v205
        %v207 = vld [vmem:[#allocation2] sm:$0xff]
        %v208 = vld [vmem:[#allocation2 + $0x8] sm:$0xff]
        %v209 = vld [vmem:[#allocation2 + $0x10] sm:$0xff]
        %v210 = vld [vmem:[#allocation2 + $0x18] sm:$0xff]
        %v211 = vld [vmem:[#allocation2 + $0x20] sm:$0xff]
        %v212 = vld [vmem:[#allocation2 + $0x28] sm:$0xff]
        %v213 = vld [vmem:[#allocation2 + $0x30] sm:$0xff]
        %v214 = vld [vmem:[#allocation2 + $0x38] sm:$0xff]
        %vm215 = vcmask 523264
        %v217 = vsel %vm215, %v206, 0
        %219 = vmatprep.subr.mxu0 0.0
        %v220 = vand.u32 %v207, 4294901760
        %221 = vmatpush1.msra.mxu0 %v220
        %222 = vmatprep.subr.mxu0 0.0
        %v223 = vand.u32 %v208, 4294901760
        %224 = vmatpush1.msra.mxu0 %v223
        %225 = vmatprep.subr.mxu0 0.0
        %v226 = vand.u32 %v209, 4294901760
        %227 = vmatpush1.msra.mxu0 %v226
        %228 = vmatprep.subr.mxu0 0.0
        %v229 = vand.u32 %v210, 4294901760
        %230 = vmatpush1.msra.mxu0 %v229
        %231 = vmatprep.subr.mxu0 0.0
        %v232 = vand.u32 %v211, 4294901760
        %233 = vmatpush1.msra.mxu0 %v232
        %234 = vmatprep.subr.mxu0 0.0
        %v235 = vand.u32 %v212, 4294901760
        %236 = vmatpush1.msra.mxu0 %v235
        %237 = vmatprep.subr.mxu0 0.0
        %v238 = vand.u32 %v213, 4294901760
        %239 = vmatpush1.msra.mxu0 %v238
        %240 = vmatprep.subr.mxu0 0.0
        %v241 = vand.u32 %v214, 4294901760
        %242 = vmatpush1.msra.mxu0 %v241
        %243 = vmatprep.subr.mxu0 0.0
        %244 = vmatpush1.msra.mxu0 0.0
        %245 = vmatprep.subr.mxu0 0.0
        %246 = vmatpush1.msra.mxu0 0.0
        %247 = vmatprep.subr.mxu0 0.0
        %248 = vmatpush1.msra.mxu0 0.0
        %249 = vmatprep.subr.mxu0 0.0
        %250 = vmatpush1.msra.mxu0 0.0
        %251 = vmatprep.subr.mxu0 0.0
        %252 = vmatpush1.msra.mxu0 0.0
        %253 = vmatprep.subr.mxu0 0.0
        %254 = vmatpush1.msra.mxu0 0.0
        %255 = vmatprep.subr.mxu0 0.0
        %256 = vmatpush1.msra.mxu0 0.0
        %257 = vmatprep.subr.mxu0 0.0
        %258 = vmatpush1.msra.mxu0 0.0
        %259 = vmatprep.subr.mxu0 0.0
        %260 = vmatpush1.msra.mxu0 0.0
        %261 = vmatprep.subr.mxu0 0.0
        %262 = vmatpush1.msra.mxu0 0.0
        %263 = vmatprep.subr.mxu0 0.0
        %264 = vmatpush1.msra.mxu0 0.0
        %265 = vmatprep.subr.mxu0 0.0
        %266 = vmatpush1.msra.mxu0 0.0
        %267 = vmatprep.subr.mxu0 0.0
        %268 = vmatpush1.msra.mxu0 0.0
        %269 = vmatprep.subr.mxu0 0.0
        %270 = vmatpush1.msra.mxu0 0.0
        %271 = vmatprep.subr.mxu0 0.0
        %272 = vmatpush1.msra.mxu0 0.0
        %273 = vmatprep.subr.mxu0 0.0
        %274 = vmatpush1.msra.mxu0 0.0
        %275 = vmatprep.subr.mxu0 0.0
        %276 = vmatpush1.msra.mxu0 0.0
        %277 = vmatprep.subr.mxu0 0.0
        %278 = vmatpush1.msra.mxu0 0.0
        %279 = vmatprep.subr.mxu0 0.0
        %280 = vmatpush1.msra.mxu0 0.0
        %281 = vmatprep.subr.mxu0 0.0
        %282 = vmatpush1.msra.mxu0 0.0
        %283 = vmatprep.subr.mxu0 0.0
        %284 = vmatpush1.msra.mxu0 0.0
        %285 = vmatprep.subr.mxu0 0.0
        %286 = vmatpush1.msra.mxu0 0.0
        %287 = vmatprep.subr.mxu0 0.0
        %288 = vmatpush1.msra.mxu0 0.0
        %289 = vmatprep.subr.mxu0 0.0
        %290 = vmatpush1.msra.mxu0 0.0
        %291 = vmatprep.mubr.f32.mxu0 0.0
        %v292 = vand.u32 %v217, 4294901760
        %v293 = vsub.f32 %v217, %v292
        %v294 = vand.u32 %v293, 4294901760
        %v295 = vsub.f32 %v293, %v294
        %v296 = vand.u32 %v295, 4294901760
        %297 = vmatmul.mubr.f32.gmra.mrb[0].mxu0 %v296
        %v298 = vpop.f32.mrb[0].mxu0
        %v299 = vadd.f32 0.0, %v298
        %v300 = vpop.f32.mrb[0].mxu0
        %301 = vdwg.mxu0
        %302 = vmatprep.subr.mxu0 0.0
        %v303 = vand.u32 %v207, 4294901760
        %v304 = vsub.f32 %v207, %v303
        %v305 = vand.u32 %v304, 4294901760
        %v306 = vsub.f32 %v304, %v305
        %v307 = vand.u32 %v306, 4294901760
        %308 = vmatpush1.msra.mxu0 %v307
        %309 = vmatprep.subr.mxu0 0.0
        %v310 = vand.u32 %v208, 4294901760
        %v311 = vsub.f32 %v208, %v310
        %v312 = vand.u32 %v311, 4294901760
        %v313 = vsub.f32 %v311, %v312
        %v314 = vand.u32 %v313, 4294901760
        %315 = vmatpush1.msra.mxu0 %v314
        %316 = vmatprep.subr.mxu0 0.0
        %v317 = vand.u32 %v209, 4294901760
        %v318 = vsub.f32 %v209, %v317
        %v319 = vand.u32 %v318, 4294901760
        %v320 = vsub.f32 %v318, %v319
        %v321 = vand.u32 %v320, 4294901760
        %322 = vmatpush1.msra.mxu0 %v321
        %323 = vmatprep.subr.mxu0 0.0
        %v324 = vand.u32 %v210, 4294901760
        %v325 = vsub.f32 %v210, %v324
        %v326 = vand.u32 %v325, 4294901760
        %v327 = vsub.f32 %v325, %v326
        %v328 = vand.u32 %v327, 4294901760
        %329 = vmatpush1.msra.mxu0 %v328
        %330 = vmatprep.subr.mxu0 0.0
        %v331 = vand.u32 %v211, 4294901760
        %v332 = vsub.f32 %v211, %v331
        %v333 = vand.u32 %v332, 4294901760
        %v334 = vsub.f32 %v332, %v333
        %v335 = vand.u32 %v334, 4294901760
        %336 = vmatpush1.msra.mxu0 %v335
        %337 = vmatprep.subr.mxu0 0.0
        %v338 = vand.u32 %v212, 4294901760
        %v339 = vsub.f32 %v212, %v338
        %v340 = vand.u32 %v339, 4294901760
        %v341 = vsub.f32 %v339, %v340
        %v342 = vand.u32 %v341, 4294901760
        %343 = vmatpush1.msra.mxu0 %v342
        %344 = vmatprep.subr.mxu0 0.0
        %v345 = vand.u32 %v213, 4294901760
        %v346 = vsub.f32 %v213, %v345
        %v347 = vand.u32 %v346, 4294901760
        %v348 = vsub.f32 %v346, %v347
        %v349 = vand.u32 %v348, 4294901760
        %350 = vmatpush1.msra.mxu0 %v349
        %351 = vmatprep.subr.mxu0 0.0
        %v352 = vand.u32 %v214, 4294901760
        %v353 = vsub.f32 %v214, %v352
        %v354 = vand.u32 %v353, 4294901760
        %v355 = vsub.f32 %v353, %v354
        %v356 = vand.u32 %v355, 4294901760
        %357 = vmatpush1.msra.mxu0 %v356
        %358 = vmatprep.subr.mxu0 0.0
        %359 = vmatpush1.msra.mxu0 0.0
        %360 = vmatprep.subr.mxu0 0.0
        %361 = vmatpush1.msra.mxu0 0.0
        %362 = vmatprep.subr.mxu0 0.0
        %363 = vmatpush1.msra.mxu0 0.0
        %364 = vmatprep.subr.mxu0 0.0
        %365 = vmatpush1.msra.mxu0 0.0
        %366 = vmatprep.subr.mxu0 0.0
        %367 = vmatpush1.msra.mxu0 0.0
        %368 = vmatprep.subr.mxu0 0.0
        %369 = vmatpush1.msra.mxu0 0.0
        %370 = vmatprep.subr.mxu0 0.0
        %371 = vmatpush1.msra.mxu0 0.0
        %372 = vmatprep.subr.mxu0 0.0
        %373 = vmatpush1.msra.mxu0 0.0
        %374 = vmatprep.subr.mxu0 0.0
        %375 = vmatpush1.msra.mxu0 0.0
        %376 = vmatprep.subr.mxu0 0.0
        %377 = vmatpush1.msra.mxu0 0.0
        %378 = vmatprep.subr.mxu0 0.0
        %379 = vmatpush1.msra.mxu0 0.0
        %380 = vmatprep.subr.mxu0 0.0
        %381 = vmatpush1.msra.mxu0 0.0
        %382 = vmatprep.subr.mxu0 0.0
        %383 = vmatpush1.msra.mxu0 0.0
        %384 = vmatprep.subr.mxu0 0.0
        %385 = vmatpush1.msra.mxu0 0.0
        %386 = vmatprep.subr.mxu0 0.0
        %387 = vmatpush1.msra.mxu0 0.0
        %388 = vmatprep.subr.mxu0 0.0
        %389 = vmatpush1.msra.mxu0 0.0
        %390 = vmatprep.subr.mxu0 0.0
        %391 = vmatpush1.msra.mxu0 0.0
        %392 = vmatprep.subr.mxu0 0.0
        %393 = vmatpush1.msra.mxu0 0.0
        %394 = vmatprep.subr.mxu0 0.0
        %395 = vmatpush1.msra.mxu0 0.0
        %396 = vmatprep.subr.mxu0 0.0
        %397 = vmatpush1.msra.mxu0 0.0
        %398 = vmatprep.subr.mxu0 0.0
        %399 = vmatpush1.msra.mxu0 0.0
        %400 = vmatprep.subr.mxu0 0.0
        %401 = vmatpush1.msra.mxu0 0.0
        %402 = vmatprep.subr.mxu0 0.0
        %403 = vmatpush1.msra.mxu0 0.0
        %404 = vmatprep.subr.mxu0 0.0
        %405 = vmatpush1.msra.mxu0 0.0
        %406 = vmatprep.mubr.f32.mxu0 0.0
        %v407 = vand.u32 %v217, 4294901760
        %408 = vmatmul.mubr.f32.gmra.mrb[0].mxu0 %v407
        %v409 = vpop.f32.mrb[0].mxu0
        %v410 = vadd.f32 %v299, %v409
        %v411 = vpop.f32.mrb[0].mxu0
        %412 = vdwg.mxu0
        %413 = vmatprep.subr.mxu0 0.0
        %v414 = vand.u32 %v207, 4294901760
        %v415 = vsub.f32 %v207, %v414
        %416 = vmatpush1.msra.mxu0 %v415
        %417 = vmatprep.subr.mxu0 0.0
        %v418 = vand.u32 %v208, 4294901760
        %v419 = vsub.f32 %v208, %v418
        %420 = vmatpush1.msra.mxu0 %v419
        %421 = vmatprep.subr.mxu0 0.0
        %v422 = vand.u32 %v209, 4294901760
        %v423 = vsub.f32 %v209, %v422
        %424 = vmatpush1.msra.mxu0 %v423
        %425 = vmatprep.subr.mxu0 0.0
        %v426 = vand.u32 %v210, 4294901760
        %v427 = vsub.f32 %v210, %v426
        %428 = vmatpush1.msra.mxu0 %v427
        %429 = vmatprep.subr.mxu0 0.0
        %v430 = vand.u32 %v211, 4294901760
        %v431 = vsub.f32 %v211, %v430
        %432 = vmatpush1.msra.mxu0 %v431
        %433 = vmatprep.subr.mxu0 0.0
        %v434 = vand.u32 %v212, 4294901760
        %v435 = vsub.f32 %v212, %v434
        %436 = vmatpush1.msra.mxu0 %v435
        %437 = vmatprep.subr.mxu0 0.0
        %v438 = vand.u32 %v213, 4294901760
        %v439 = vsub.f32 %v213, %v438
        %440 = vmatpush1.msra.mxu0 %v439
        %441 = vmatprep.subr.mxu0 0.0
        %v442 = vand.u32 %v214, 4294901760
        %v443 = vsub.f32 %v214, %v442
        %444 = vmatpush1.msra.mxu0 %v443
        %445 = vmatprep.subr.mxu0 0.0
        %446 = vmatpush1.msra.mxu0 0.0
        %447 = vmatprep.subr.mxu0 0.0
        %448 = vmatpush1.msra.mxu0 0.0
        %449 = vmatprep.subr.mxu0 0.0
        %450 = vmatpush1.msra.mxu0 0.0
        %451 = vmatprep.subr.mxu0 0.0
        %452 = vmatpush1.msra.mxu0 0.0
        %453 = vmatprep.subr.mxu0 0.0
        %454 = vmatpush1.msra.mxu0 0.0
        %455 = vmatprep.subr.mxu0 0.0
        %456 = vmatpush1.msra.mxu0 0.0
        %457 = vmatprep.subr.mxu0 0.0
        %458 = vmatpush1.msra.mxu0 0.0
        %459 = vmatprep.subr.mxu0 0.0
        %460 = vmatpush1.msra.mxu0 0.0
        %461 = vmatprep.subr.mxu0 0.0
        %462 = vmatpush1.msra.mxu0 0.0
        %463 = vmatprep.subr.mxu0 0.0
        %464 = vmatpush1.msra.mxu0 0.0
        %465 = vmatprep.subr.mxu0 0.0
        %466 = vmatpush1.msra.mxu0 0.0
        %467 = vmatprep.subr.mxu0 0.0
        %468 = vmatpush1.msra.mxu0 0.0
        %469 = vmatprep.subr.mxu0 0.0
        %470 = vmatpush1.msra.mxu0 0.0
        %471 = vmatprep.subr.mxu0 0.0
        %472 = vmatpush1.msra.mxu0 0.0
        %473 = vmatprep.subr.mxu0 0.0
        %474 = vmatpush1.msra.mxu0 0.0
        %475 = vmatprep.subr.mxu0 0.0
        %476 = vmatpush1.msra.mxu0 0.0
        %477 = vmatprep.subr.mxu0 0.0
        %478 = vmatpush1.msra.mxu0 0.0
        %479 = vmatprep.subr.mxu0 0.0
        %480 = vmatpush1.msra.mxu0 0.0
        %481 = vmatprep.subr.mxu0 0.0
        %482 = vmatpush1.msra.mxu0 0.0
        %483 = vmatprep.subr.mxu0 0.0
        %484 = vmatpush1.msra.mxu0 0.0
        %485 = vmatprep.subr.mxu0 0.0
        %486 = vmatpush1.msra.mxu0 0.0
        %487 = vmatprep.subr.mxu0 0.0
        %488 = vmatpush1.msra.mxu0 0.0
        %489 = vmatprep.subr.mxu0 0.0
        %490 = vmatpush1.msra.mxu0 0.0
        %491 = vmatprep.subr.mxu0 0.0
        %492 = vmatpush1.msra.mxu0 0.0
        %493 = vmatprep.mubr.f32.mxu0 0.0
        %v494 = vand.u32 %v217, 4294901760
        %v495 = vsub.f32 %v217, %v494
        %496 = vmatmul.mubr.f32.gmra.mrb[0].mxu0 %v495
        %v497 = vpop.f32.mrb[0].mxu0
        %v498 = vadd.f32 %v410, %v497
        %v499 = vpop.f32.mrb[0].mxu0
        %500 = vdwg.mxu0
        %501 = vmatprep.subr.mxu0 0.0
        %v502 = vand.u32 %v207, 4294901760
        %503 = vmatpush1.msra.mxu0 %v502
        %504 = vmatprep.subr.mxu0 0.0
        %v505 = vand.u32 %v208, 4294901760
        %506 = vmatpush1.msra.mxu0 %v505
        %507 = vmatprep.subr.mxu0 0.0
        %v508 = vand.u32 %v209, 4294901760
        %509 = vmatpush1.msra.mxu0 %v508
        %510 = vmatprep.subr.mxu0 0.0
        %v511 = vand.u32 %v210, 4294901760
        %512 = vmatpush1.msra.mxu0 %v511
        %513 = vmatprep.subr.mxu0 0.0
        %v514 = vand.u32 %v211, 4294901760
        %515 = vmatpush1.msra.mxu0 %v514
        %516 = vmatprep.subr.mxu0 0.0
        %v517 = vand.u32 %v212, 4294901760
        %518 = vmatpush1.msra.mxu0 %v517
        %519 = vmatprep.subr.mxu0 0.0
        %v520 = vand.u32 %v213, 4294901760
        %521 = vmatpush1.msra.mxu0 %v520
        %522 = vmatprep.subr.mxu0 0.0
        %v523 = vand.u32 %v214, 4294901760
        %524 = vmatpush1.msra.mxu0 %v523
        %525 = vmatprep.subr.mxu0 0.0
        %526 = vmatpush1.msra.mxu0 0.0
        %527 = vmatprep.subr.mxu0 0.0
        %528 = vmatpush1.msra.mxu0 0.0
        %529 = vmatprep.subr.mxu0 0.0
        %530 = vmatpush1.msra.mxu0 0.0
        %531 = vmatprep.subr.mxu0 0.0
        %532 = vmatpush1.msra.mxu0 0.0
        %533 = vmatprep.subr.mxu0 0.0
        %534 = vmatpush1.msra.mxu0 0.0
        %535 = vmatprep.subr.mxu0 0.0
        %536 = vmatpush1.msra.mxu0 0.0
        %537 = vmatprep.subr.mxu0 0.0
        %538 = vmatpush1.msra.mxu0 0.0
        %539 = vmatprep.subr.mxu0 0.0
        %540 = vmatpush1.msra.mxu0 0.0
        %541 = vmatprep.subr.mxu0 0.0
        %542 = vmatpush1.msra.mxu0 0.0
        %543 = vmatprep.subr.mxu0 0.0
        %544 = vmatpush1.msra.mxu0 0.0
        %545 = vmatprep.subr.mxu0 0.0
        %546 = vmatpush1.msra.mxu0 0.0
        %547 = vmatprep.subr.mxu0 0.0
        %548 = vmatpush1.msra.mxu0 0.0
        %549 = vmatprep.subr.mxu0 0.0
        %550 = vmatpush1.msra.mxu0 0.0
        %551 = vmatprep.subr.mxu0 0.0
        %552 = vmatpush1.msra.mxu0 0.0
        %553 = vmatprep.subr.mxu0 0.0
        %554 = vmatpush1.msra.mxu0 0.0
        %555 = vmatprep.subr.mxu0 0.0
        %556 = vmatpush1.msra.mxu0 0.0
        %557 = vmatprep.subr.mxu0 0.0
        %558 = vmatpush1.msra.mxu0 0.0
        %559 = vmatprep.subr.mxu0 0.0
        %560 = vmatpush1.msra.mxu0 0.0
        %561 = vmatprep.subr.mxu0 0.0
        %562 = vmatpush1.msra.mxu0 0.0
        %563 = vmatprep.subr.mxu0 0.0
        %564 = vmatpush1.msra.mxu0 0.0
        %565 = vmatprep.subr.mxu0 0.0
        %566 = vmatpush1.msra.mxu0 0.0
        %567 = vmatprep.subr.mxu0 0.0
        %568 = vmatpush1.msra.mxu0 0.0
        %569 = vmatprep.subr.mxu0 0.0
        %570 = vmatpush1.msra.mxu0 0.0
        %571 = vmatprep.subr.mxu0 0.0
        %572 = vmatpush1.msra.mxu0 0.0
        %573 = vmatprep.mubr.f32.mxu0 0.0
        %v574 = vand.u32 %v217, 4294901760
        %v575 = vsub.f32 %v217, %v574
        %v576 = vand.u32 %v575, 4294901760
        %577 = vmatmul.mubr.f32.gmra.mrb[0].mxu0 %v576
        %v578 = vpop.f32.mrb[0].mxu0
        %v579 = vadd.f32 %v498, %v578
        %v580 = vpop.f32.mrb[0].mxu0
        %581 = vdwg.mxu0
        %582 = vmatprep.subr.mxu0 0.0
        %v583 = vand.u32 %v207, 4294901760
        %v584 = vsub.f32 %v207, %v583
        %v585 = vand.u32 %v584, 4294901760
        %586 = vmatpush1.msra.mxu0 %v585
        %587 = vmatprep.subr.mxu0 0.0
        %v588 = vand.u32 %v208, 4294901760
        %v589 = vsub.f32 %v208, %v588
        %v590 = vand.u32 %v589, 4294901760
        %591 = vmatpush1.msra.mxu0 %v590
        %592 = vmatprep.subr.mxu0 0.0
        %v593 = vand.u32 %v209, 4294901760
        %v594 = vsub.f32 %v209, %v593
        %v595 = vand.u32 %v594, 4294901760
        %596 = vmatpush1.msra.mxu0 %v595
        %597 = vmatprep.subr.mxu0 0.0
        %v598 = vand.u32 %v210, 4294901760
        %v599 = vsub.f32 %v210, %v598
        %v600 = vand.u32 %v599, 4294901760
        %601 = vmatpush1.msra.mxu0 %v600
        %602 = vmatprep.subr.mxu0 0.0
        %v603 = vand.u32 %v211, 4294901760
        %v604 = vsub.f32 %v211, %v603
        %v605 = vand.u32 %v604, 4294901760
        %606 = vmatpush1.msra.mxu0 %v605
        %607 = vmatprep.subr.mxu0 0.0
        %v608 = vand.u32 %v212, 4294901760
        %v609 = vsub.f32 %v212, %v608
        %v610 = vand.u32 %v609, 4294901760
        %611 = vmatpush1.msra.mxu0 %v610
        %612 = vmatprep.subr.mxu0 0.0
        %v613 = vand.u32 %v213, 4294901760
        %v614 = vsub.f32 %v213, %v613
        %v615 = vand.u32 %v614, 4294901760
        %616 = vmatpush1.msra.mxu0 %v615
        %617 = vmatprep.subr.mxu0 0.0
        %v618 = vand.u32 %v214, 4294901760
        %v619 = vsub.f32 %v214, %v618
        %v620 = vand.u32 %v619, 4294901760
        %621 = vmatpush1.msra.mxu0 %v620
        %622 = vmatprep.subr.mxu0 0.0
        %623 = vmatpush1.msra.mxu0 0.0
        %624 = vmatprep.subr.mxu0 0.0
        %625 = vmatpush1.msra.mxu0 0.0
        %626 = vmatprep.subr.mxu0 0.0
        %627 = vmatpush1.msra.mxu0 0.0
        %628 = vmatprep.subr.mxu0 0.0
        %629 = vmatpush1.msra.mxu0 0.0
        %630 = vmatprep.subr.mxu0 0.0
        %631 = vmatpush1.msra.mxu0 0.0
        %632 = vmatprep.subr.mxu0 0.0
        %633 = vmatpush1.msra.mxu0 0.0
        %634 = vmatprep.subr.mxu0 0.0
        %635 = vmatpush1.msra.mxu0 0.0
        %636 = vmatprep.subr.mxu0 0.0
        %637 = vmatpush1.msra.mxu0 0.0
        %638 = vmatprep.subr.mxu0 0.0
        %639 = vmatpush1.msra.mxu0 0.0
        %640 = vmatprep.subr.mxu0 0.0
        %641 = vmatpush1.msra.mxu0 0.0
        %642 = vmatprep.subr.mxu0 0.0
        %643 = vmatpush1.msra.mxu0 0.0
        %644 = vmatprep.subr.mxu0 0.0
        %645 = vmatpush1.msra.mxu0 0.0
        %646 = vmatprep.subr.mxu0 0.0
        %647 = vmatpush1.msra.mxu0 0.0
        %648 = vmatprep.subr.mxu0 0.0
        %649 = vmatpush1.msra.mxu0 0.0
        %650 = vmatprep.subr.mxu0 0.0
        %651 = vmatpush1.msra.mxu0 0.0
        %652 = vmatprep.subr.mxu0 0.0
        %653 = vmatpush1.msra.mxu0 0.0
        %654 = vmatprep.subr.mxu0 0.0
        %655 = vmatpush1.msra.mxu0 0.0
        %656 = vmatprep.subr.mxu0 0.0
        %657 = vmatpush1.msra.mxu0 0.0
        %658 = vmatprep.subr.mxu0 0.0
        %659 = vmatpush1.msra.mxu0 0.0
        %660 = vmatprep.subr.mxu0 0.0
        %661 = vmatpush1.msra.mxu0 0.0
        %662 = vmatprep.subr.mxu0 0.0
        %663 = vmatpush1.msra.mxu0 0.0
        %664 = vmatprep.subr.mxu0 0.0
        %665 = vmatpush1.msra.mxu0 0.0
        %666 = vmatprep.subr.mxu0 0.0
        %667 = vmatpush1.msra.mxu0 0.0
        %668 = vmatprep.subr.mxu0 0.0
        %669 = vmatpush1.msra.mxu0 0.0
        %670 = vmatprep.mubr.f32.mxu0 0.0
        %v671 = vand.u32 %v217, 4294901760
        %672 = vmatmul.mubr.f32.gmra.mrb[0].mxu0 %v671
        %v673 = vpop.f32.mrb[0].mxu0
        %v674 = vadd.f32 %v579, %v673
        %v675 = vpop.f32.mrb[0].mxu0
        %676 = vdwg.mxu0
        %677 = vmatprep.subr.mxu0 0.0
        %v678 = vand.u32 %v207, 4294901760
        %679 = vmatpush1.msra.mxu0 %v678
        %680 = vmatprep.subr.mxu0 0.0
        %v681 = vand.u32 %v208, 4294901760
        %682 = vmatpush1.msra.mxu0 %v681
        %683 = vmatprep.subr.mxu0 0.0
        %v684 = vand.u32 %v209, 4294901760
        %685 = vmatpush1.msra.mxu0 %v684
        %686 = vmatprep.subr.mxu0 0.0
        %v687 = vand.u32 %v210, 4294901760
        %688 = vmatpush1.msra.mxu0 %v687
        %689 = vmatprep.subr.mxu0 0.0
        %v690 = vand.u32 %v211, 4294901760
        %691 = vmatpush1.msra.mxu0 %v690
        %692 = vmatprep.subr.mxu0 0.0
        %v693 = vand.u32 %v212, 4294901760
        %694 = vmatpush1.msra.mxu0 %v693
        %695 = vmatprep.subr.mxu0 0.0
        %v696 = vand.u32 %v213, 4294901760
        %697 = vmatpush1.msra.mxu0 %v696
        %698 = vmatprep.subr.mxu0 0.0
        %v699 = vand.u32 %v214, 4294901760
        %700 = vmatpush1.msra.mxu0 %v699
        %701 = vmatprep.subr.mxu0 0.0
        %702 = vmatpush1.msra.mxu0 0.0
        %703 = vmatprep.subr.mxu0 0.0
        %704 = vmatpush1.msra.mxu0 0.0
        %705 = vmatprep.subr.mxu0 0.0
        %706 = vmatpush1.msra.mxu0 0.0
        %707 = vmatprep.subr.mxu0 0.0
        %708 = vmatpush1.msra.mxu0 0.0
        %709 = vmatprep.subr.mxu0 0.0
        %710 = vmatpush1.msra.mxu0 0.0
        %711 = vmatprep.subr.mxu0 0.0
        %712 = vmatpush1.msra.mxu0 0.0
        %713 = vmatprep.subr.mxu0 0.0
        %714 = vmatpush1.msra.mxu0 0.0
        %715 = vmatprep.subr.mxu0 0.0
        %716 = vmatpush1.msra.mxu0 0.0
        %717 = vmatprep.subr.mxu0 0.0
        %718 = vmatpush1.msra.mxu0 0.0
        %719 = vmatprep.subr.mxu0 0.0
        %720 = vmatpush1.msra.mxu0 0.0
        %721 = vmatprep.subr.mxu0 0.0
        %722 = vmatpush1.msra.mxu0 0.0
        %723 = vmatprep.subr.mxu0 0.0
        %724 = vmatpush1.msra.mxu0 0.0
        %725 = vmatprep.subr.mxu0 0.0
        %726 = vmatpush1.msra.mxu0 0.0
        %727 = vmatprep.subr.mxu0 0.0
        %728 = vmatpush1.msra.mxu0 0.0
        %729 = vmatprep.subr.mxu0 0.0
        %730 = vmatpush1.msra.mxu0 0.0
        %731 = vmatprep.subr.mxu0 0.0
        %732 = vmatpush1.msra.mxu0 0.0
        %733 = vmatprep.subr.mxu0 0.0
        %734 = vmatpush1.msra.mxu0 0.0
        %735 = vmatprep.subr.mxu0 0.0
        %736 = vmatpush1.msra.mxu0 0.0
        %737 = vmatprep.subr.mxu0 0.0
        %738 = vmatpush1.msra.mxu0 0.0
        %739 = vmatprep.subr.mxu0 0.0
        %740 = vmatpush1.msra.mxu0 0.0
        %741 = vmatprep.subr.mxu0 0.0
        %742 = vmatpush1.msra.mxu0 0.0
        %743 = vmatprep.subr.mxu0 0.0
        %744 = vmatpush1.msra.mxu0 0.0
        %745 = vmatprep.subr.mxu0 0.0
        %746 = vmatpush1.msra.mxu0 0.0
        %747 = vmatprep.subr.mxu0 0.0
        %748 = vmatpush1.msra.mxu0 0.0
        %749 = vmatprep.mubr.f32.mxu0 0.0
        %v750 = vand.u32 %v217, 4294901760
        %751 = vmatmul.mubr.f32.gmra.mrb[0].mxu0 %v750
        %v752 = vpop.f32.mrb[0].mxu0
        %v753 = vadd.f32 %v674, %v752
        %v754 = vpop.f32.mrb[0].mxu0
        %755 = vdwg.mxu0
        %v756 = vld [vmem:[%s197] sm:$0xff]
        %758 = vset.pattern.permute.xlu0 0
        %759 = vperm.xlu0 %758, %v756
        %v760 = vpop.permute.xlu0 %759
        %v762 = vmul.f32 %v753, %v760
        %763 = vst [vmem:[%s189] sm:$0xff] %v762
        %s764 = sand.u32 %s99, 1
        %s765 = scalar_lea.sflag [#allocation4], %s764
        %s766 = sand.u32 %s99, 1
        %s767 = smul.addr %s766, 8
        %s768 = scalar_lea.vmem [#allocation5], %s767
        // Predicated region
        $region37: #{tpu_custom_call.1} parent=31 // pred_check
          %p769 = pneg %p109
        $region38: #{tpu_custom_call.1} parent=31 // pred_check_branch
          %771 = sbr.rel (%p769) target = $region40
        $region39: #{tpu_custom_call.1} parent=31 // pred_region
          %s773 = ssub.s32 128, 128
          %774 = vsyncadd %s765, %s773
          %s775 = smul.addr %s18, 128
          %s776 = scalar_lea.hbm %s3, %s775
          %s778 = sshll.u32 %s768, 4
          %s779 = int_to_ptr.vmem [resolvable:$true] %s778
          %781 = dma.vmem_to_hbm [thread:$0]  %s779, 128, %s776, %s765
        $region40: #{tpu_custom_call.1} parent=31 // pred_fallthru
          _
      $region32: #{tpu_custom_call.1} parent=5 // pred_fallthru
        _
      %p782 = scmp.le.s32.totalorder 2, %s13
      // Predicated region
      $region41: #{tpu_custom_call.1} parent=5 // pred_check
        %p783 = pneg %p782
      $region42: #{tpu_custom_call.1} parent=5 // pred_check_branch
        %785 = sbr.rel (%p783) target = $region44
      $region43: #{tpu_custom_call.1} parent=5 // pred_region
        %s786 = ssub.s32 %s13, 2
        // Predicated region
        $region45: #{tpu_custom_call.1} parent=43 // pred_check
          %p787 = pneg %p115
        $region46: #{tpu_custom_call.1} parent=43 // pred_check_branch
          %789 = sbr.rel (%p787) target = $region48
        $region47: #{tpu_custom_call.1} parent=43 // pred_region
          %s790 = sand.u32 %s100, 1
          %s791 = scalar_lea.sflag [#allocation4], %s790
          %s792 = sand.u32 %s100, 1
          %s793 = smul.addr %s792, 8
          %s794 = scalar_lea.vmem [#allocation5], %s793
          %795 = dma.done %s791, 128
        $region48: #{tpu_custom_call.1} parent=43 // pred_fallthru
          _
      $region44: #{tpu_custom_call.1} parent=5 // pred_fallthru
        _
    $region6: #{tpu_custom_call.1} parent=1 // loop_footer
      %s17 = sadd.s32 1, %s13
    $region7: #{tpu_custom_call.1} parent=1 // loop_footer_branch
      %12 = sbr.rel target = $region3
    $region8: #{tpu_custom_call.1} parent=1 // loop_exit
      _
    %796 = vsyncpa [#allocation3], 1
    %s797 = scalar_lea.sflag [#allocation3], 1
    %798 = vsyncpa %s797, 1
    %799 = vsyncpa [#allocation4], 1
    %s800 = scalar_lea.sflag [#allocation4], 1
    %801 = vsyncpa %s800, 1

</llo_original>
